<compile_context>
chip_gen: v6e
topology: v6e:2x2x1
jax: 0.10.0
libtpu: 0.0.40
codegen_flags: <defaults>
</compile_context>

<pallas_src>
import jax
import jax.numpy as jnp
from jax.experimental import pallas as pl
from jax.experimental.pallas import tpu as pltpu


def _normalize_ewma_kernel(stats_ref, x_ref, o_ref):
    # stats_ref: (2, D_eff) f32 VMEM -- row 0 = mean, row 1 = inv_std
    # x_ref / o_ref: (TB, D_eff) tiles in the native input/output dtype
    mean = stats_ref[0:1, :]
    inv_std = stats_ref[1:2, :]
    x = x_ref[...].astype(jnp.float32)
    o_ref[...] = ((x - mean) * inv_std).astype(o_ref.dtype)


def _choose_tile_rows(rows: int, d_eff: int) -> int:
    # 4 resident data tiles (double-buffered in + out); keep them under ~12 MiB
    # assuming worst-case f32 elements so the pipeline fits every generation's
    # scoped-VMEM default with headroom (incl. v7x's smaller VMEM).
    budget_bytes = 12 * 1024 * 1024
    tb = budget_bytes // (4 * 4 * d_eff)
    tb = max(8, min(tb, 1024))          # 512-1024 rows ~ HBM-roofline plateau
    tb = (tb // 8) * 8                  # sublane-aligned tile
    if rows <= tb:
        return rows                     # single block == full array extent
    return tb


def normalize_ewma(x, running_mean, running_mean_sq, debiasing_term,
                   epsilon: float = 0.01):
    """x: (B, D); running stats: (D,); debiasing_term: scalar."""
    B, D = x.shape
    out_dtype = x.dtype

    # ---- one-time O(D) stat math, hoisted out of the gridded hot loop ----
    d = jnp.maximum(jnp.asarray(debiasing_term, jnp.float32), epsilon)
    mean = running_mean.astype(jnp.float32) / d
    mean_sq = running_mean_sq.astype(jnp.float32) / d
    var = jnp.maximum(mean_sq - mean * mean, 0.01)
    inv_std = jax.lax.rsqrt(var)

    # ---- lane-dense fold: make the last dim a full 128-lane register ----
    fold = 128 // D if (D < 128 and 128 % D == 0) else 1
    rows = pl.cdiv(B, fold)
    pad_rows = rows * fold - B
    x_in = jnp.pad(x, ((0, pad_rows), (0, 0))) if pad_rows else x
    d_eff = D * fold
    x_in = x_in.reshape(rows, d_eff)

    # row 0 = mean, row 1 = inv_std, each lane-tiled to D_eff
    stats = jnp.stack([jnp.tile(mean, fold), jnp.tile(inv_std, fold)], axis=0)

    tb = _choose_tile_rows(rows, d_eff)
    grid = (pl.cdiv(rows, tb),)

    out = pl.pallas_call(
        _normalize_ewma_kernel,
        out_shape=jax.ShapeDtypeStruct((rows, d_eff), out_dtype),
        grid=grid,
        in_specs=[
            pl.BlockSpec((2, d_eff), lambda i: (0, 0)),    # stats (resident)
            pl.BlockSpec((tb, d_eff), lambda i: (i, 0)),   # x tile
        ],
        out_specs=pl.BlockSpec((tb, d_eff), lambda i: (i, 0)),
        compiler_params=pltpu.CompilerParams(
            dimension_semantics=("parallel",),
            vmem_limit_bytes=32 * 1024 * 1024,
        ),
    )(stats, x_in)

    out = out.reshape(rows * fold, D)
    if pad_rows:
        out = out[:B]
    return out


def normalize_ewma_ref(x, running_mean, running_mean_sq, debiasing_term,
                       epsilon: float = 0.01):
    d = jnp.maximum(debiasing_term, epsilon)
    mean = running_mean / d
    mean_sq = running_mean_sq / d
    var = jnp.maximum(mean_sq - mean ** 2, 0.01)
    return (x - mean[None, :]) / jnp.sqrt(var[None, :])


if __name__ == "__main__":
    insize = 32
    batch = 8
    beta = 0.99
    epsilon = 0.01

    key = jax.random.PRNGKey(0)
    kx, km, ks = jax.random.split(key, 3)

    # Module __init__ zeros the running stats; use deterministic nonzero stats
    # (as if a few EWMA updates had occurred) to exercise the full math.
    x = jax.random.normal(kx, (batch, insize), dtype=jnp.float32)
    running_mean = 0.1 * jax.random.normal(km, (insize,), dtype=jnp.float32)
    running_mean_sq = running_mean ** 2 + jnp.abs(
        jax.random.normal(ks, (insize,), dtype=jnp.float32))
    debiasing_term = jnp.float32(1.0 - beta ** 5)   # after 5 EWMA steps

    out = jax.block_until_ready(
        normalize_ewma(x, running_mean, running_mean_sq, debiasing_term,
                       epsilon=epsilon))
    ref = normalize_ewma_ref(x, running_mean, running_mean_sq, debiasing_term,
                             epsilon=epsilon)
    assert out.shape == (batch, insize) and out.dtype == x.dtype
    assert jnp.allclose(out, ref, atol=1e-5, rtol=1e-5)

    # Exercise the row-fold padding path (B not a multiple of 128 // D).
    x2 = jax.random.normal(jax.random.PRNGKey(1), (18, insize), jnp.float32)
    out2 = jax.block_until_ready(
        normalize_ewma(x2, running_mean, running_mean_sq, debiasing_term,
                       epsilon=epsilon))
    ref2 = normalize_ewma_ref(x2, running_mean, running_mean_sq,
                              debiasing_term, epsilon=epsilon)
    assert out2.shape == x2.shape
    assert jnp.allclose(out2, ref2, atol=1e-5, rtol=1e-5)

    # Exercise native-dtype (bf16) I/O with in-kernel f32 compute.
    x3 = x2.astype(jnp.bfloat16)
    out3 = jax.block_until_ready(
        normalize_ewma(x3, running_mean, running_mean_sq, debiasing_term,
                       epsilon=epsilon))
    ref3 = normalize_ewma_ref(x3.astype(jnp.float32), running_mean,
                              running_mean_sq, debiasing_term, epsilon=epsilon)
    assert out3.dtype == jnp.bfloat16
    assert jnp.allclose(out3.astype(jnp.float32), ref3, atol=3e-2, rtol=3e-2)

    print("KERNEL_OK")
</pallas_src>

<mosaic_0001>
module attributes {stable_mosaic.version = 11 : i64} {
  func.func @_normalize_ewma_kernel(%arg0: i32, %arg1: memref<2x128xf32, #tpu.memory_space<vmem>>, %arg2: memref<2x128xf32, #tpu.memory_space<vmem>>, %arg3: memref<2x128xf32, #tpu.memory_space<vmem>>) attributes {dimension_semantics = [#tpu.dimension_semantics<parallel>], iteration_bounds = array<i64: 1>, scalar_prefetch = 0 : i64, scratch_operands = 0 : i64, tpu.core_type = #tpu.core_type<tc>, window_params = [{pipeline_mode = #tpu.pipeline_mode<synchronous>, transform_indices = @transform_0, window_bounds = array<i64: 2, 128>}, {transform_indices = @transform_1, window_bounds = array<i64: 2, 128>}, {transform_indices = @transform_2, window_bounds = array<i64: 2, 128>}]} {
    %c0 = arith.constant 0 : index
    %c0_0 = arith.constant 0 : index
    %0 = vector.load %arg1[%c0, %c0_0] : memref<2x128xf32, #tpu.memory_space<vmem>>, vector<1x128xf32>
    %c1 = arith.constant 1 : index
    %c0_1 = arith.constant 0 : index
    %1 = vector.load %arg1[%c1, %c0_1] : memref<2x128xf32, #tpu.memory_space<vmem>>, vector<1x128xf32>
    %c0_2 = arith.constant 0 : index
    %c0_3 = arith.constant 0 : index
    %2 = vector.load %arg2[%c0_2, %c0_3] : memref<2x128xf32, #tpu.memory_space<vmem>>, vector<2x128xf32>
    %3 = vector.broadcast %0 : vector<1x128xf32> to vector<2x128xf32>
    %4 = arith.subf %2, %3 : vector<2x128xf32>
    %5 = vector.broadcast %1 : vector<1x128xf32> to vector<2x128xf32>
    %6 = arith.mulf %4, %5 : vector<2x128xf32>
    %c0_4 = arith.constant 0 : index
    %c0_5 = arith.constant 0 : index
    %7 = vector.load %arg3[%c0_4, %c0_5] : memref<2x128xf32, #tpu.memory_space<vmem>>, vector<2x128xf32>
    tpu.vector_store %arg3[%c0_4, %c0_5], %6 {strides = array<i32>} : memref<2x128xf32, #tpu.memory_space<vmem>>, vector<2x128xf32>,
    return
  }
  func.func @transform_0(%arg0: i32) -> (i32, i32) {
    %c0_i32 = arith.constant 0 : i32
    %c0_i32_0 = arith.constant 0 : i32
    %c0_i32_1 = arith.constant 0 : i32
    return %c0_i32, %c0_i32_0 : i32, i32
  }
  func.func @transform_1(%arg0: i32) -> (i32, i32) {
    %c0_i32 = arith.constant 0 : i32
    %c0_i32_0 = arith.constant 0 : i32
    return %arg0, %c0_i32 : i32, i32
  }
  func.func @transform_2(%arg0: i32) -> (i32, i32) {
    %c0_i32 = arith.constant 0 : i32
    %c0_i32_0 = arith.constant 0 : i32
    return %arg0, %c0_i32 : i32, i32
  }
}

</mosaic_0001>

<llo_original>
// kernel: tpu_custom_call.1
$region0: #{tpu_custom_call.1}
  #allocation0 [shape = 'u32[]', space=smem, size = 0x4, offset = 0x4, fixed_abs, tag = 'smem constant byte address 0x4 - core index']
  #allocation1 [shape = 'u32[144,128]{1,0:T(1,128)}', space=vmem, size = 0x12000, scoped, tag = 'internal scratch']
  %s0 = inlined_call_operand.hbm [shape: f32[2,128], index: 0, kind: input, shape index: {}]
  %s1 = inlined_call_operand.hbm [shape: f32[2,128], index: 1, kind: input, shape index: {}]
  %s2 = inlined_call_operand.hbm [shape: f32[2,128], index: 2, kind: output, shape index: {}]
  %s3 = sld [smem:[#allocation0]]
  $region26: #{tpu_custom_call.1} parent=0
    _
  %s5 = ssub.s32 1, %s3
  %s6 = scalar_select 0, %s5, %s3
  $region1: #{tpu_custom_call.1} parent=0
    #allocation2 [shape = 'u8[1024]{0}', space=vmem, size = 0x400, scoped, tag = 'input window, operand 0, single buffered']
    #allocation3 [shape = 's32[1]{0}', space=sflag, size = 0x4, scoped, tag = 'scoped memory for tpu_custom_call.1']
    #allocation4 [shape = 's32[1]{0}', space=sflag, size = 0x4, scoped, tag = 'scoped memory for tpu_custom_call.1']
    #allocation5 [shape = 'u8[1024]{0}', space=vmem, size = 0x400, scoped, tag = 'input window, operand 1, single buffered']
    #allocation6 [shape = 's32[1]{0}', space=sflag, size = 0x4, scoped, tag = 'scoped memory for tpu_custom_call.1']
    #allocation7 [shape = 'u8[1024]{0}', space=vmem, size = 0x400, scoped, tag = 'output window, operand 0, single buffered']
    %7 = vsyncpa [#allocation3], 0
    %8 = vsyncpa [#allocation6], 0
    %9 = vsyncpa [#allocation4], 0
    // Predicated region
    $region2: #{tpu_custom_call.1} parent=1 // pred_check
      _
    $region3: #{tpu_custom_call.1} parent=1 // pred_check_branch
      %11 = sbr.rel (0) target = $region5
    $region4: #{tpu_custom_call.1} parent=1 // pred_region
      %s13 = ssub.s32 32, 32
      %14 = vsyncadd [#allocation3], %s13
      %s16 = sshll.u32 [#allocation2], 4
      %s17 = int_to_ptr.vmem [resolvable:$true] %s16
      %19 = dma.hbm_to_vmem [thread:$0]  %s0, 32, %s17, [#allocation3]
    $region5: #{tpu_custom_call.1} parent=1 // pred_fallthru
      _
    // Predicated region
    $region6: #{tpu_custom_call.1} parent=1 // pred_check
      _
    $region7: #{tpu_custom_call.1} parent=1 // pred_check_branch
      %21 = sbr.rel (0) target = $region9
    $region8: #{tpu_custom_call.1} parent=1 // pred_region
      %s23 = ssub.s32 32, 32
      %24 = vsyncadd [#allocation6], %s23
      %s26 = sshll.u32 [#allocation5], 4
      %s27 = int_to_ptr.vmem [resolvable:$true] %s26
      %29 = dma.hbm_to_vmem [thread:$0]  %s1, 32, %s27, [#allocation6]
    $region9: #{tpu_custom_call.1} parent=1 // pred_fallthru
      _
    // Predicated region
    $region10: #{tpu_custom_call.1} parent=1 // pred_check
      _
    $region11: #{tpu_custom_call.1} parent=1 // pred_check_branch
      %31 = sbr.rel (0) target = $region13
    $region12: #{tpu_custom_call.1} parent=1 // pred_region
      %32 = dma.done [#allocation3], 32
    $region13: #{tpu_custom_call.1} parent=1 // pred_fallthru
      _
    // Predicated region
    $region14: #{tpu_custom_call.1} parent=1 // pred_check
      _
    $region15: #{tpu_custom_call.1} parent=1 // pred_check_branch
      %34 = sbr.rel (0) target = $region17
    $region16: #{tpu_custom_call.1} parent=1 // pred_region
      %35 = dma.done [#allocation6], 32
    $region17: #{tpu_custom_call.1} parent=1 // pred_fallthru
      _
    %v36 = vld [vmem:[#allocation2] sm:$0x1]
    %v37 = vld [vmem:[#allocation2 + $0x1] sm:$0x1]
    %v38 = vld [vmem:[#allocation5] sm:$0x3]
    %v39 = vlaneseq
    %v40 = vshrl.u32 %v39, 7
    %v41 = vsub.s32 0, %v40
    %v42 = vrot.slane %v36, %v41
    %v43 = vsub.f32 %v38, %v42
    %v44 = vlaneseq
    %v45 = vshrl.u32 %v44, 7
    %v46 = vsub.s32 0, %v45
    %v47 = vrot.slane %v37, %v46
    %v48 = vmul.f32 %v43, %v47
    %49 = vst [vmem:[#allocation7] sm:$0x3] %v48
    // Predicated region
    $region18: #{tpu_custom_call.1} parent=1 // pred_check
      _
    $region19: #{tpu_custom_call.1} parent=1 // pred_check_branch
      %51 = sbr.rel (0) target = $region21
    $region20: #{tpu_custom_call.1} parent=1 // pred_region
      %s53 = ssub.s32 32, 32
      %54 = vsyncadd [#allocation4], %s53
      %s56 = sshll.u32 [#allocation7], 4
      %s57 = int_to_ptr.vmem [resolvable:$true] %s56
      %59 = dma.vmem_to_hbm [thread:$0]  %s57, 32, %s2, [#allocation4]
    $region21: #{tpu_custom_call.1} parent=1 // pred_fallthru
      _
    // Predicated region
    $region22: #{tpu_custom_call.1} parent=1 // pred_check
      _
    $region23: #{tpu_custom_call.1} parent=1 // pred_check_branch
      %61 = sbr.rel (0) target = $region25
    $region24: #{tpu_custom_call.1} parent=1 // pred_region
      %62 = dma.done [#allocation4], 32
    $region25: #{tpu_custom_call.1} parent=1 // pred_fallthru
      _
    %63 = vsyncpa [#allocation3], 1
    %64 = vsyncpa [#allocation6], 1
    %65 = vsyncpa [#allocation4], 1

</llo_original>
